<compile_context>
chip_gen: v5e
topology: v5e:2x2
jax: 0.10.0
libtpu: 0.0.40
codegen_flags: <defaults>
</compile_context>

<pallas_src>
import math
from functools import partial

import numpy as np
import jax
import jax.numpy as jnp
from jax.experimental import pallas as pl
from jax.experimental.pallas import tpu as pltpu

_LANES = 128
_MAX_BLOCK_ROWS = 4096  # 4096 x 128 f32 = 2 MiB / block -> 4 MiB double-buffered

# Random mantissa bits kept per output dtype so the [0,1) uniform is exactly
# representable at the target precision (cast can never round up to 1.0).
_MANTISSA_BITS = {"float32": 23, "bfloat16": 7, "float16": 10}
# Sublane alignment per output dtype (2-byte dtypes pack 2 rows per sublane).
_SUBLANE_MULT = {"float32": 8, "bfloat16": 16, "float16": 16}

_EXP_ONE = 0x3F800000  # f32 bit pattern of 1.0


def _bits_to_uniform(bits_u32, mbits, out_dtype):
    """uint32 random bits -> uniform [0,1) exactly representable in out_dtype."""
    mant = bits_u32 >> jnp.uint32(32 - mbits)
    if mbits < 23:
        mant = mant << jnp.uint32(23 - mbits)
    f = pltpu.bitcast(mant | jnp.uint32(_EXP_ONE), jnp.float32) - jnp.float32(1.0)
    return f.astype(out_dtype)


def _rand_like_kernel(seed_ref, o_ref, *, block_rows, mbits, use_hw_prng):
    """Fill o_ref (block_rows, 128) with uniform [0,1) randoms in o_ref.dtype."""
    pid = pl.program_id(0)
    shape = o_ref.shape  # (block_rows, 128)

    if use_hw_prng:
        # Hardware PRNG: seeded per (call, block) so blocks never repeat.
        pltpu.prng_seed(seed_ref[0], pid)
        bits = pltpu.prng_random_bits(shape)
        if bits.dtype != jnp.uint32:
            bits = pltpu.bitcast(bits, jnp.uint32)
    else:
        # Software counter-hash fallback (non-TPU / interpret backends).
        # Scalar offset (seed + block base) computed once on the scalar path.
        off = (seed_ref[0].astype(jnp.uint32) * jnp.uint32(0x9E3779B1)
               + (pid * (block_rows * _LANES)).astype(jnp.uint32))
        row = jax.lax.broadcasted_iota(jnp.uint32, shape, 0)
        lane = jax.lax.broadcasted_iota(jnp.uint32, shape, 1)
        x = (row << jnp.uint32(7)) + lane + off
        x = x ^ (x >> jnp.uint32(16))
        x = x * jnp.uint32(0x7FEB352D)
        x = x ^ (x >> jnp.uint32(15))
        x = x * jnp.uint32(0x846CA68B)
        x = x ^ (x >> jnp.uint32(16))
        bits = x

    o_ref[...] = _bits_to_uniform(bits, mbits, o_ref.dtype)


_USE_HW_PRNG = None  # resolved lazily from the active backend


def _hw_prng_available():
    global _USE_HW_PRNG
    if _USE_HW_PRNG is None:
        _USE_HW_PRNG = (jax.default_backend() == "tpu")
    return _USE_HW_PRNG


@partial(jax.jit, static_argnames=("shape", "dtype", "use_hw_prng"))
def _rand_like_jit(seed_arr, *, shape, dtype, use_hw_prng):
    n = math.prod(shape)
    name = np.dtype(dtype).name
    mbits = _MANTISSA_BITS.get(name, 23)
    sub = _SUBLANE_MULT.get(name, 8)

    rows = max(pl.cdiv(n, _LANES), 1)
    rows = ((rows + sub - 1) // sub) * sub          # dtype-aware sublane align
    block_rows = min(_MAX_BLOCK_ROWS, rows)          # 2 MiB f32 / 1 MiB bf16 blocks
    num_blocks = pl.cdiv(rows, block_rows)
    rows_padded = num_blocks * block_rows

    out_padded = pl.pallas_call(
        partial(_rand_like_kernel, block_rows=block_rows, mbits=mbits,
                use_hw_prng=use_hw_prng),
        out_shape=jax.ShapeDtypeStruct((rows_padded, _LANES), dtype),
        grid=(num_blocks,),
        in_specs=[pl.BlockSpec(memory_space=pltpu.MemorySpace.SMEM)],
        out_specs=pl.BlockSpec((block_rows, _LANES), lambda i: (i, 0)),
        compiler_params=pltpu.CompilerParams(
            dimension_semantics=("parallel",)),
    )(seed_arr)

    flat = out_padded.reshape(-1)
    if rows_padded * _LANES != n:
        # TODO(synk): non-(128*sub)-multiple sizes still pay one extra copy for
        # the un-pad slice; a masked tail-store in the last block would remove it.
        flat = flat[:n]
    return flat.reshape(shape)


def rand_like_pallas(x, seed):
    """Pallas equivalent of torch.rand_like(x) for float inputs."""
    seed_arr = jnp.asarray([seed], dtype=jnp.int32)
    return _rand_like_jit(seed_arr, shape=tuple(x.shape),
                          dtype=np.dtype(x.dtype),
                          use_hw_prng=_hw_prng_available())


class Model:
    """Mirror of the PyTorch Model: forward(x1) = rand_like(x1)."""

    def __init__(self, seed: int = 0):
        # Per-call counter so every forward() draws fresh randoms,
        # matching torch.rand_like semantics (not a fixed tensor).
        self._counter = int(seed)

    def __call__(self, x1):
        seed = self._counter
        self._counter += 1
        return rand_like_pallas(x1, seed)


if __name__ == "__main__":
    key = jax.random.PRNGKey(0)
    # Shape consistent with the PyTorch script: x1 = torch.randn(3, 4, 5, 6)
    x1 = jax.random.normal(key, (3, 4, 5, 6), dtype=jnp.float32)

    model = Model()
    out = jax.block_until_ready(model(x1))
    out2 = jax.block_until_ready(model(x1))

    # Sanity checks: shape/dtype match, values uniform in [0,1), fresh per call.
    assert out.shape == x1.shape
    assert out.dtype == x1.dtype
    assert bool(jnp.all(out >= 0.0)) and bool(jnp.all(out < 1.0))
    assert bool(jnp.any(out != out2))

    print("KERNEL_OK")
</pallas_src>

<mosaic_0001>
module attributes {stable_mosaic.version = 11 : i64} {
  func.func @_rand_like_kernel(%arg0: i32, %arg1: memref<1xi32, #tpu.memory_space<smem>>, %arg2: memref<8x128xf32, #tpu.memory_space<vmem>>) attributes {dimension_semantics = [#tpu.dimension_semantics<parallel>], iteration_bounds = array<i64: 1>, scalar_prefetch = 0 : i64, scratch_operands = 0 : i64, tpu.core_type = #tpu.core_type<tc>, window_params = [{transform_indices = @transform_0, window_bounds = array<i64: 1>}, {transform_indices = @transform_1, window_bounds = array<i64: 8, 128>}]} {
    %c0 = arith.constant 0 : index
    %0 = memref.load %arg1[%c0] : memref<1xi32, #tpu.memory_space<smem>>
    %c-1640531535_i32 = arith.constant -1640531535 : i32
    %1 = arith.muli %0, %c-1640531535_i32 : i32
    %c1024_i32 = arith.constant 1024 : i32
    %2 = arith.muli %arg0, %c1024_i32 : i32
    %3 = arith.addi %1, %2 : i32
    %4 = tpu.iota {dimensions = array<i32: 0>} : vector<8x128xi32>
    %5 = tpu.iota {dimensions = array<i32: 1>} : vector<8x128xi32>
    %c7_i32 = arith.constant 7 : i32
    %6 = vector.broadcast %c7_i32 : i32 to vector<8x128xi32>
    %7 = arith.shli %4, %6 : vector<8x128xi32>
    %8 = arith.addi %7, %5 : vector<8x128xi32>
    %9 = vector.broadcast %3 : i32 to vector<8x128xi32>
    %10 = arith.addi %8, %9 : vector<8x128xi32>
    %c16_i32 = arith.constant 16 : i32
    %11 = vector.broadcast %c16_i32 : i32 to vector<8x128xi32>
    %12 = arith.shrui %10, %11 : vector<8x128xi32>
    %13 = arith.xori %10, %12 : vector<8x128xi32>
    %c2146121005_i32 = arith.constant 2146121005 : i32
    %14 = vector.broadcast %c2146121005_i32 : i32 to vector<8x128xi32>
    %15 = arith.muli %13, %14 : vector<8x128xi32>
    %c15_i32 = arith.constant 15 : i32
    %16 = vector.broadcast %c15_i32 : i32 to vector<8x128xi32>
    %17 = arith.shrui %15, %16 : vector<8x128xi32>
    %18 = arith.xori %15, %17 : vector<8x128xi32>
    %c-2073254261_i32 = arith.constant -2073254261 : i32
    %19 = vector.broadcast %c-2073254261_i32 : i32 to vector<8x128xi32>
    %20 = arith.muli %18, %19 : vector<8x128xi32>
    %c16_i32_0 = arith.constant 16 : i32
    %21 = vector.broadcast %c16_i32_0 : i32 to vector<8x128xi32>
    %22 = arith.shrui %20, %21 : vector<8x128xi32>
    %23 = arith.xori %20, %22 : vector<8x128xi32>
    %c9_i32 = arith.constant 9 : i32
    %24 = vector.broadcast %c9_i32 : i32 to vector<8x128xi32>
    %25 = arith.shrui %23, %24 : vector<8x128xi32>
    %c1065353216_i32 = arith.constant 1065353216 : i32
    %26 = vector.broadcast %c1065353216_i32 : i32 to vector<8x128xi32>
    %27 = arith.ori %25, %26 : vector<8x128xi32>
    %28 = tpu.bitcast %27 : vector<8x128xi32> -> vector<8x128xf32>
    %cst = arith.constant 1.000000e+00 : f32
    %29 = vector.broadcast %cst : f32 to vector<8x128xf32>
    %30 = arith.subf %28, %29 : vector<8x128xf32>
    %c0_1 = arith.constant 0 : index
    %c0_2 = arith.constant 0 : index
    %31 = vector.load %arg2[%c0_1, %c0_2] : memref<8x128xf32, #tpu.memory_space<vmem>>, vector<8x128xf32>
    tpu.vector_store %arg2[%c0_1, %c0_2], %30 {strides = array<i32>} : memref<8x128xf32, #tpu.memory_space<vmem>>, vector<8x128xf32>,
    return
  }
  func.func @transform_0(%arg0: i32) -> i32 {
    %c0_i32 = arith.constant 0 : i32
    %c0_i32_0 = arith.constant 0 : i32
    return %c0_i32 : i32
  }
  func.func @transform_1(%arg0: i32) -> (i32, i32) {
    %c0_i32 = arith.constant 0 : i32
    %c0_i32_0 = arith.constant 0 : i32
    return %arg0, %c0_i32 : i32, i32
  }
}

</mosaic_0001>

<llo_original>
// kernel: _rand_like_jit.1
$region0: #{_rand_like_jit.1}
  #allocation0 [shape = 'u32[]', space=smem, size = 0x4, offset = 0x4, fixed_abs, tag = 'smem constant byte address 0x4 - core index']
  #allocation1 [shape = 'u32[72,128]{1,0:T(1,128)}', space=vmem, size = 0x9000, scoped, tag = 'internal scratch']
  #allocation2 [shape = 's32[1]{0:T(128)S(6)}', space=smem, size = 0x200, scoped, tag = 'scoped memory for _rand_like_jit.1']
  %s0 = inlined_call_operand.<no memory space> [shape: s32[1], index: 0, kind: input, shape index: {}]
  %s1 = inlined_call_operand.vmem [shape: f32[8,128], index: 1, kind: output, shape index: {}]
  %s2 = sld [smem:[#allocation0]]
  $region14: #{_rand_like_jit.1} parent=0
    _
  %s4 = ssub.s32 1, %s2
  %s5 = scalar_select 0, %s4, %s2
  %6 = sst [smem:[#allocation2]] %s0
  // Predicated region
  $region2: #{_rand_like_jit.1} parent=0 // pred_check
    _
  $region3: #{_rand_like_jit.1} parent=0 // pred_check_branch
    %8 = sbr.rel (0) target = $region5
  $region4: #{_rand_like_jit.1} parent=0 // pred_region
    _
  $region5: #{_rand_like_jit.1} parent=0 // pred_fallthru
    _
  %s9 = sld [smem:[#allocation2]]
  %s10 = smul.u32 %s9, 2654435761
  %s11 = smul.u32 0, 1024
  %s12 = sadd.s32 %s10, %s11
  %v13 = vlaneseq
  %v14 = vshrl.u32 %v13, 7
  %v15 = vlaneseq
  %v16 = vand.u32 %v15, 127
  %v17 = vshll.u32 %v14, 7
  %v18 = vadd.s32 %v17, %v16
  %v19 = vstv %s12
  %v20 = vadd.s32 %v18, %v19
  %v21 = vshrl.u32 %v20, 16
  %v22 = vxor.u32 %v20, %v21
  %v23 = vmul.u32 %v22, 2146121005
  %v24 = vshrl.u32 %v23, 15
  %v25 = vxor.u32 %v23, %v24
  %v26 = vmul.u32 %v25, 2221713035
  %v27 = vshrl.u32 %v26, 16
  %v28 = vxor.u32 %v26, %v27
  %v29 = vshrl.u32 %v28, 9
  %v30 = vor.u32 %v29, 1065353216
  %v32 = vsub.f32 %v30, 1.0
  %33 = vst [vmem:[%s1] sm:$0xff] %v32
  // Predicated region
  $region6: #{_rand_like_jit.1} parent=0 // pred_check
    _
  $region7: #{_rand_like_jit.1} parent=0 // pred_check_branch
    %35 = sbr.rel (0) target = $region9
  $region8: #{_rand_like_jit.1} parent=0 // pred_region
    _
  $region9: #{_rand_like_jit.1} parent=0 // pred_fallthru
    _
  // Predicated region
  $region10: #{_rand_like_jit.1} parent=0 // pred_check
    _
  $region11: #{_rand_like_jit.1} parent=0 // pred_check_branch
    %37 = sbr.rel (0) target = $region13
  $region12: #{_rand_like_jit.1} parent=0 // pred_region
    _
  $region13: #{_rand_like_jit.1} parent=0 // pred_fallthru
    _

</llo_original>
